<compile_context>
chip_gen: v7x
topology: tpu7x:2x2x1
jax: 0.10.0
libtpu: 0.0.40
codegen_flags: <defaults>
</compile_context>

<pallas_src>
import jax
import jax.numpy as jnp
from jax.experimental import pallas as pl
from jax.experimental.pallas import tpu as pltpu


def _round_up(v, m):
    return ((v + m - 1) // m) * m


def dqn_kernel(x_ref,
               w1_ref, b1_ref,
               w2_ref, b2_ref,
               w3_ref, b3_ref,
               w4_ref, b4_ref,
               w5_ref, b5_ref,
               out_ref):
    # Streamed activations cast to bf16 in-kernel; matmuls accumulate in f32
    # on the MXU (preferred_element_type), bias-add and ReLU stay in f32,
    # then cast back to bf16 for the next MXU pass.
    h = x_ref[...].astype(jnp.bfloat16)

    h = jnp.dot(h, w1_ref[...], preferred_element_type=jnp.float32) + b1_ref[...]
    h = jnp.maximum(h, 0.0).astype(jnp.bfloat16)

    h = jnp.dot(h, w2_ref[...], preferred_element_type=jnp.float32) + b2_ref[...]
    h = jnp.maximum(h, 0.0).astype(jnp.bfloat16)

    h = jnp.dot(h, w3_ref[...], preferred_element_type=jnp.float32) + b3_ref[...]
    h = jnp.maximum(h, 0.0).astype(jnp.bfloat16)

    h = jnp.dot(h, w4_ref[...], preferred_element_type=jnp.float32) + b4_ref[...]
    h = jnp.maximum(h, 0.0).astype(jnp.bfloat16)

    out_ref[...] = (jnp.dot(h, w5_ref[...], preferred_element_type=jnp.float32)
                    + b5_ref[...]).astype(out_ref.dtype)


def prepare_params(params):
    """One-time parameter prep (hoisted out of the per-call forward):
    bf16 weights (halves the dominant weight DMA), f32 biases (bias-add runs
    on the f32 MXU output)."""
    return [(jnp.asarray(w, jnp.bfloat16), jnp.asarray(b, jnp.float32))
            for w, b in params]


def dqn_forward(x, params, *, tb=2048):
    """x: (B, inputs) float32. params: prepared list of (W_t bf16, b f32),
    W_t shaped (in_features, out_features)."""
    B, n_in = x.shape
    n_out = params[-1][0].shape[1]

    # Batch tiling: large tiles amortize the ~0.35us per-grid-step overhead.
    # For big batches keep tb a multiple of 256 and make sure there are at
    # least 2 tiles so v7x's two TensorCores both get work (dimension
    # semantics "parallel"); for small batches collapse to a single tile
    # rounded to 16 rows (bf16 sublane packing).
    if B >= 512:
        tb = min(_round_up(tb, 256), _round_up(pl.cdiv(B, 2), 256))
    else:
        tb = _round_up(B, 16)
    b_p = _round_up(B, tb)
    if b_p != B:
        # Padded rows produce bias-driven garbage and are sliced away below.
        x = jnp.pad(x, ((0, b_p - B), (0, 0)))

    flat_args = [x]
    in_specs = [pl.BlockSpec((tb, n_in), lambda i: (i, 0))]
    for w, b in params:
        flat_args.append(w)
        flat_args.append(b)
        # Constant index_map: weights/biases are DMA'd once and stay resident
        # in VMEM across all batch tiles.
        in_specs.append(pl.BlockSpec(w.shape, lambda i: (0, 0)))
        in_specs.append(pl.BlockSpec(b.shape, lambda i: (0, 0)))

    flops = 2 * b_p * sum(w.shape[0] * w.shape[1] for w, _ in params)
    bytes_accessed = (
        x.size * x.dtype.itemsize
        + sum(w.size * w.dtype.itemsize + b.size * b.dtype.itemsize
              for w, b in params)
        + b_p * n_out * 4)

    out = pl.pallas_call(
        dqn_kernel,
        out_shape=jax.ShapeDtypeStruct((b_p, n_out), jnp.float32),
        grid_spec=pltpu.PrefetchScalarGridSpec(
            num_scalar_prefetch=0,
            grid=(b_p // tb,),
            in_specs=in_specs,
            # Narrow, unpadded output (width == n_out): 16 B/row writeback
            # instead of 512 B/row padded f32 lanes.
            out_specs=pl.BlockSpec((tb, n_out), lambda i: (i, 0)),
        ),
        compiler_params=pltpu.CompilerParams(
            dimension_semantics=("parallel",),
            vmem_limit_bytes=32 * 1024 * 1024),
        cost_estimate=pl.CostEstimate(flops=flops, transcendentals=0,
                                      bytes_accessed=bytes_accessed),
    )(*flat_args)

    if b_p != B:
        out = out[:B]
    return out


def init_params(key, inputs, outputs):
    """Deterministic init mimicking nn.Linear default (uniform +/- 1/sqrt(fan_in)).
    Weights are returned pre-transposed as (in_features, out_features)."""
    dims = [inputs, 128, 256, 128, 32, outputs]
    params = []
    for i in range(len(dims) - 1):
        fan_in, fan_out = dims[i], dims[i + 1]
        key, kw, kb = jax.random.split(key, 3)
        bound = 1.0 / (fan_in ** 0.5)
        w_t = jax.random.uniform(kw, (fan_in, fan_out), jnp.float32, -bound, bound)
        b = jax.random.uniform(kb, (1, fan_out), jnp.float32, -bound, bound)
        params.append((w_t, b))
    return params


def dqn_reference(x, params):
    h = x
    for i, (w, b) in enumerate(params):
        h = h @ w + b
        if i < len(params) - 1:
            h = jnp.maximum(h, 0.0)
    return h


if __name__ == "__main__":
    key = jax.random.PRNGKey(0)
    INPUTS, OUTPUTS = 16, 4

    key, kx, kx2 = jax.random.split(key, 3)
    params = init_params(key, INPUTS, OUTPUTS)
    fast_params = prepare_params(params)   # one-time: bf16 weights, f32 biases

    # Small batch (single tile path).
    B = 8
    x = jax.random.normal(kx, (B, INPUTS), jnp.float32)
    out = jax.block_until_ready(dqn_forward(x, fast_params))
    ref = dqn_reference(x, params)
    assert out.shape == (B, OUTPUTS), out.shape
    # bf16 matmul inputs with f32 accumulation -> loosened tolerance.
    assert jnp.allclose(out, ref, atol=5e-2, rtol=5e-2), "mismatch (small batch)"

    # Larger batch exercising the multi-tile (>=2 grid steps) path.
    B2 = 1024
    x2 = jax.random.normal(kx2, (B2, INPUTS), jnp.float32)
    out2 = jax.block_until_ready(dqn_forward(x2, fast_params))
    ref2 = dqn_reference(x2, params)
    assert out2.shape == (B2, OUTPUTS), out2.shape
    assert jnp.allclose(out2, ref2, atol=5e-2, rtol=5e-2), "mismatch (large batch)"

    print("KERNEL_OK")
</pallas_src>

<mosaic_0001>
module attributes {stable_mosaic.version = 11 : i64} {
  func.func @dqn_kernel(%arg0: i32, %arg1: memref<16x16xf32, #tpu.memory_space<vmem>>, %arg2: memref<16x128xbf16, #tpu.memory_space<vmem>>, %arg3: memref<1x128xf32, #tpu.memory_space<vmem>>, %arg4: memref<128x256xbf16, #tpu.memory_space<vmem>>, %arg5: memref<1x256xf32, #tpu.memory_space<vmem>>, %arg6: memref<256x128xbf16, #tpu.memory_space<vmem>>, %arg7: memref<1x128xf32, #tpu.memory_space<vmem>>, %arg8: memref<128x32xbf16, #tpu.memory_space<vmem>>, %arg9: memref<1x32xf32, #tpu.memory_space<vmem>>, %arg10: memref<32x4xbf16, #tpu.memory_space<vmem>>, %arg11: memref<1x4xf32, #tpu.memory_space<vmem>>, %arg12: memref<16x4xf32, #tpu.memory_space<vmem>>) attributes {dimension_semantics = [#tpu.dimension_semantics<parallel>], iteration_bounds = array<i64: 1>, scalar_prefetch = 0 : i64, scratch_operands = 0 : i64, tpu.core_type = #tpu.core_type<tc>, window_params = [{transform_indices = @transform_0, window_bounds = array<i64: 16, 16>}, {pipeline_mode = #tpu.pipeline_mode<synchronous>, transform_indices = @transform_1, window_bounds = array<i64: 16, 128>}, {pipeline_mode = #tpu.pipeline_mode<synchronous>, transform_indices = @transform_2, window_bounds = array<i64: 1, 128>}, {pipeline_mode = #tpu.pipeline_mode<synchronous>, transform_indices = @transform_3, window_bounds = array<i64: 128, 256>}, {pipeline_mode = #tpu.pipeline_mode<synchronous>, transform_indices = @transform_4, window_bounds = array<i64: 1, 256>}, {pipeline_mode = #tpu.pipeline_mode<synchronous>, transform_indices = @transform_5, window_bounds = array<i64: 256, 128>}, {pipeline_mode = #tpu.pipeline_mode<synchronous>, transform_indices = @transform_6, window_bounds = array<i64: 1, 128>}, {pipeline_mode = #tpu.pipeline_mode<synchronous>, transform_indices = @transform_7, window_bounds = array<i64: 128, 32>}, {pipeline_mode = #tpu.pipeline_mode<synchronous>, transform_indices = @transform_8, window_bounds = array<i64: 1, 32>}, {pipeline_mode = #tpu.pipeline_mode<synchronous>, transform_indices = @transform_9, window_bounds = array<i64: 32, 4>}, {pipeline_mode = #tpu.pipeline_mode<synchronous>, transform_indices = @transform_10, window_bounds = array<i64: 1, 4>}, {transform_indices = @transform_11, window_bounds = array<i64: 16, 4>}]} {
    %c0 = arith.constant 0 : index
    %c0_0 = arith.constant 0 : index
    %0 = vector.load %arg1[%c0, %c0_0] : memref<16x16xf32, #tpu.memory_space<vmem>>, vector<16x16xf32>
    %1 = arith.truncf %0 : vector<16x16xf32> to vector<16x16xbf16>
    %c0_1 = arith.constant 0 : index
    %c0_2 = arith.constant 0 : index
    %2 = vector.load %arg2[%c0_1, %c0_2] : memref<16x128xbf16, #tpu.memory_space<vmem>>, vector<16x128xbf16>
    %cst = arith.constant dense<0.000000e+00> : vector<16x128xf32>
    %3 = tpu.matmul %1, %2, %cst {dimension_numbers = #tpu.dot_dimension_numbers<[1], [0], [0], [1], [0, 0, 1, 1], [], []>} : vector<16x16xbf16>, vector<16x128xbf16>, vector<16x128xf32> -> vector<16x128xf32>
    %c0_3 = arith.constant 0 : index
    %c0_4 = arith.constant 0 : index
    %4 = vector.load %arg3[%c0_3, %c0_4] : memref<1x128xf32, #tpu.memory_space<vmem>>, vector<1x128xf32>
    %5 = vector.broadcast %4 : vector<1x128xf32> to vector<16x128xf32>
    %6 = arith.addf %3, %5 : vector<16x128xf32>
    %cst_5 = arith.constant 0.000000e+00 : f32
    %7 = vector.broadcast %cst_5 : f32 to vector<16x128xf32>
    %8 = arith.maximumf %6, %7 : vector<16x128xf32>
    %9 = arith.truncf %8 : vector<16x128xf32> to vector<16x128xbf16>
    %c0_6 = arith.constant 0 : index
    %c0_7 = arith.constant 0 : index
    %10 = vector.load %arg4[%c0_6, %c0_7] : memref<128x256xbf16, #tpu.memory_space<vmem>>, vector<128x256xbf16>
    %cst_8 = arith.constant dense<0.000000e+00> : vector<16x256xf32>
    %11 = tpu.matmul %9, %10, %cst_8 {dimension_numbers = #tpu.dot_dimension_numbers<[1], [0], [0], [1], [0, 0, 1, 1], [], []>} : vector<16x128xbf16>, vector<128x256xbf16>, vector<16x256xf32> -> vector<16x256xf32>
    %c0_9 = arith.constant 0 : index
    %c0_10 = arith.constant 0 : index
    %12 = vector.load %arg5[%c0_9, %c0_10] : memref<1x256xf32, #tpu.memory_space<vmem>>, vector<1x256xf32>
    %13 = vector.broadcast %12 : vector<1x256xf32> to vector<16x256xf32>
    %14 = arith.addf %11, %13 : vector<16x256xf32>
    %cst_11 = arith.constant 0.000000e+00 : f32
    %15 = vector.broadcast %cst_11 : f32 to vector<16x256xf32>
    %16 = arith.maximumf %14, %15 : vector<16x256xf32>
    %17 = arith.truncf %16 : vector<16x256xf32> to vector<16x256xbf16>
    %c0_12 = arith.constant 0 : index
    %c0_13 = arith.constant 0 : index
    %18 = vector.load %arg6[%c0_12, %c0_13] : memref<256x128xbf16, #tpu.memory_space<vmem>>, vector<256x128xbf16>
    %cst_14 = arith.constant dense<0.000000e+00> : vector<16x128xf32>
    %19 = tpu.matmul %17, %18, %cst_14 {dimension_numbers = #tpu.dot_dimension_numbers<[1], [0], [0], [1], [0, 0, 1, 1], [], []>} : vector<16x256xbf16>, vector<256x128xbf16>, vector<16x128xf32> -> vector<16x128xf32>
    %c0_15 = arith.constant 0 : index
    %c0_16 = arith.constant 0 : index
    %20 = vector.load %arg7[%c0_15, %c0_16] : memref<1x128xf32, #tpu.memory_space<vmem>>, vector<1x128xf32>
    %21 = vector.broadcast %20 : vector<1x128xf32> to vector<16x128xf32>
    %22 = arith.addf %19, %21 : vector<16x128xf32>
    %cst_17 = arith.constant 0.000000e+00 : f32
    %23 = vector.broadcast %cst_17 : f32 to vector<16x128xf32>
    %24 = arith.maximumf %22, %23 : vector<16x128xf32>
    %25 = arith.truncf %24 : vector<16x128xf32> to vector<16x128xbf16>
    %c0_18 = arith.constant 0 : index
    %c0_19 = arith.constant 0 : index
    %26 = vector.load %arg8[%c0_18, %c0_19] : memref<128x32xbf16, #tpu.memory_space<vmem>>, vector<128x32xbf16>
    %cst_20 = arith.constant dense<0.000000e+00> : vector<16x32xf32>
    %27 = tpu.matmul %25, %26, %cst_20 {dimension_numbers = #tpu.dot_dimension_numbers<[1], [0], [0], [1], [0, 0, 1, 1], [], []>} : vector<16x128xbf16>, vector<128x32xbf16>, vector<16x32xf32> -> vector<16x32xf32>
    %c0_21 = arith.constant 0 : index
    %c0_22 = arith.constant 0 : index
    %28 = vector.load %arg9[%c0_21, %c0_22] : memref<1x32xf32, #tpu.memory_space<vmem>>, vector<1x32xf32>
    %29 = vector.broadcast %28 : vector<1x32xf32> to vector<16x32xf32>
    %30 = arith.addf %27, %29 : vector<16x32xf32>
    %cst_23 = arith.constant 0.000000e+00 : f32
    %31 = vector.broadcast %cst_23 : f32 to vector<16x32xf32>
    %32 = arith.maximumf %30, %31 : vector<16x32xf32>
    %33 = arith.truncf %32 : vector<16x32xf32> to vector<16x32xbf16>
    %c0_24 = arith.constant 0 : index
    %c0_25 = arith.constant 0 : index
    %34 = vector.load %arg10[%c0_24, %c0_25] : memref<32x4xbf16, #tpu.memory_space<vmem>>, vector<32x4xbf16>
    %cst_26 = arith.constant dense<0.000000e+00> : vector<16x4xf32>
    %35 = tpu.matmul %33, %34, %cst_26 {dimension_numbers = #tpu.dot_dimension_numbers<[1], [0], [0], [1], [0, 0, 1, 1], [], []>} : vector<16x32xbf16>, vector<32x4xbf16>, vector<16x4xf32> -> vector<16x4xf32>
    %c0_27 = arith.constant 0 : index
    %c0_28 = arith.constant 0 : index
    %36 = vector.load %arg11[%c0_27, %c0_28] : memref<1x4xf32, #tpu.memory_space<vmem>>, vector<1x4xf32>
    %37 = vector.broadcast %36 : vector<1x4xf32> to vector<16x4xf32>
    %38 = arith.addf %35, %37 : vector<16x4xf32>
    %c0_29 = arith.constant 0 : index
    %c0_30 = arith.constant 0 : index
    %39 = vector.load %arg12[%c0_29, %c0_30] : memref<16x4xf32, #tpu.memory_space<vmem>>, vector<16x4xf32>
    tpu.vector_store %arg12[%c0_29, %c0_30], %38 {strides = array<i32>} : memref<16x4xf32, #tpu.memory_space<vmem>>, vector<16x4xf32>,
    return
  }
  func.func @transform_0(%arg0: i32) -> (i32, i32) {
    %c0_i32 = arith.constant 0 : i32
    %c0_i32_0 = arith.constant 0 : i32
    return %arg0, %c0_i32 : i32, i32
  }
  func.func @transform_1(%arg0: i32) -> (i32, i32) {
    %c0_i32 = arith.constant 0 : i32
    %c0_i32_0 = arith.constant 0 : i32
    %c0_i32_1 = arith.constant 0 : i32
    return %c0_i32, %c0_i32_0 : i32, i32
  }
  func.func @transform_2(%arg0: i32) -> (i32, i32) {
    %c0_i32 = arith.constant 0 : i32
    %c0_i32_0 = arith.constant 0 : i32
    %c0_i32_1 = arith.constant 0 : i32
    return %c0_i32, %c0_i32_0 : i32, i32
  }
  func.func @transform_3(%arg0: i32) -> (i32, i32) {
    %c0_i32 = arith.constant 0 : i32
    %c0_i32_0 = arith.constant 0 : i32
    %c0_i32_1 = arith.constant 0 : i32
    return %c0_i32, %c0_i32_0 : i32, i32
  }
  func.func @transform_4(%arg0: i32) -> (i32, i32) {
    %c0_i32 = arith.constant 0 : i32
    %c0_i32_0 = arith.constant 0 : i32
    %c0_i32_1 = arith.constant 0 : i32
    return %c0_i32, %c0_i32_0 : i32, i32
  }
  func.func @transform_5(%arg0: i32) -> (i32, i32) {
    %c0_i32 = arith.constant 0 : i32
    %c0_i32_0 = arith.constant 0 : i32
    %c0_i32_1 = arith.constant 0 : i32
    return %c0_i32, %c0_i32_0 : i32, i32
  }
  func.func @transform_6(%arg0: i32) -> (i32, i32) {
    %c0_i32 = arith.constant 0 : i32
    %c0_i32_0 = arith.constant 0 : i32
    %c0_i32_1 = arith.constant 0 : i32
    return %c0_i32, %c0_i32_0 : i32, i32
  }
  func.func @transform_7(%arg0: i32) -> (i32, i32) {
    %c0_i32 = arith.constant 0 : i32
    %c0_i32_0 = arith.constant 0 : i32
    %c0_i32_1 = arith.constant 0 : i32
    return %c0_i32, %c0_i32_0 : i32, i32
  }
  func.func @transform_8(%arg0: i32) -> (i32, i32) {
    %c0_i32 = arith.constant 0 : i32
    %c0_i32_0 = arith.constant 0 : i32
    %c0_i32_1 = arith.constant 0 : i32
    return %c0_i32, %c0_i32_0 : i32, i32
  }
  func.func @transform_9(%arg0: i32) -> (i32, i32) {
    %c0_i32 = arith.constant 0 : i32
    %c0_i32_0 = arith.constant 0 : i32
    %c0_i32_1 = arith.constant 0 : i32
    return %c0_i32, %c0_i32_0 : i32, i32
  }
  func.func @transform_10(%arg0: i32) -> (i32, i32) {
    %c0_i32 = arith.constant 0 : i32
    %c0_i32_0 = arith.constant 0 : i32
    %c0_i32_1 = arith.constant 0 : i32
    return %c0_i32, %c0_i32_0 : i32, i32
  }
  func.func @transform_11(%arg0: i32) -> (i32, i32) {
    %c0_i32 = arith.constant 0 : i32
    %c0_i32_0 = arith.constant 0 : i32
    return %arg0, %c0_i32 : i32, i32
  }
}

</mosaic_0001>

<llo_original>
// kernel: tpu_custom_call.1
$region0: #{tpu_custom_call.1}
  #allocation0 [shape = 'u32[]', space=smem, size = 0x4, offset = 0x4, fixed_abs, tag = 'smem constant byte address 0x4 - core index']
  #allocation1 [shape = 'u32[144,128]{1,0:T(1,128)}', space=vmem, size = 0x12000, scoped, tag = 'internal scratch']
  %s0 = inlined_call_operand.vmem [shape: f32[16,16], index: 0, kind: input, shape index: {}]
  %s1 = inlined_call_operand.vmem [shape: bf16[16,128], index: 1, kind: input, shape index: {}]
  %s2 = inlined_call_operand.vmem [shape: f32[1,128], index: 2, kind: input, shape index: {}]
  %s3 = inlined_call_operand.hbm [shape: bf16[128,256], index: 3, kind: input, shape index: {}]
  %s4 = inlined_call_operand.vmem [shape: f32[1,256], index: 4, kind: input, shape index: {}]
  %s5 = inlined_call_operand.hbm [shape: bf16[256,128], index: 5, kind: input, shape index: {}]
  %s6 = inlined_call_operand.vmem [shape: f32[1,128], index: 6, kind: input, shape index: {}]
  %s7 = inlined_call_operand.vmem [shape: bf16[128,32], index: 7, kind: input, shape index: {}]
  %s8 = inlined_call_operand.vmem [shape: f32[1,32], index: 8, kind: input, shape index: {}]
  %s9 = inlined_call_operand.vmem [shape: bf16[32,4], index: 9, kind: input, shape index: {}]
  %s10 = inlined_call_operand.vmem [shape: f32[1,4], index: 10, kind: input, shape index: {}]
  %s11 = inlined_call_operand.vmem [shape: f32[16,4], index: 11, kind: output, shape index: {}]
  %s12 = sld [smem:[#allocation0]]
  $region62: #{tpu_custom_call.1} parent=0
    _
  %s14 = ssub.s32 1, %s12
  %s15 = scalar_select 0, %s14, %s12
  $region1: #{tpu_custom_call.1} parent=0
    #allocation2 [shape = 'u8[65536]{0}', space=vmem, size = 0x10000, scoped, tag = 'input window, operand 3, single buffered']
    #allocation3 [shape = 's32[1]{0}', space=sflag, size = 0x4, scoped, tag = 'scoped memory for tpu_custom_call.1']
    #allocation4 [shape = 'u8[65536]{0}', space=vmem, size = 0x10000, scoped, tag = 'input window, operand 5, single buffered']
    #allocation5 [shape = 's32[1]{0}', space=sflag, size = 0x4, scoped, tag = 'scoped memory for tpu_custom_call.1']
    %16 = vsyncpa [#allocation3], 0
    %17 = vsyncpa [#allocation5], 0
    // Predicated region
    $region2: #{tpu_custom_call.1} parent=1 // pred_check
      _
    $region3: #{tpu_custom_call.1} parent=1 // pred_check_branch
      %19 = sbr.rel (0) target = $region5
    $region4: #{tpu_custom_call.1} parent=1 // pred_region
      _
    $region5: #{tpu_custom_call.1} parent=1 // pred_fallthru
      _
    // Predicated region
    $region6: #{tpu_custom_call.1} parent=1 // pred_check
      _
    $region7: #{tpu_custom_call.1} parent=1 // pred_check_branch
      %21 = sbr.rel (0) target = $region9
    $region8: #{tpu_custom_call.1} parent=1 // pred_region
      _
    $region9: #{tpu_custom_call.1} parent=1 // pred_fallthru
      _
    // Predicated region
    $region10: #{tpu_custom_call.1} parent=1 // pred_check
      _
    $region11: #{tpu_custom_call.1} parent=1 // pred_check_branch
      %23 = sbr.rel (0) target = $region13
    $region12: #{tpu_custom_call.1} parent=1 // pred_region
      _
    $region13: #{tpu_custom_call.1} parent=1 // pred_fallthru
      _
    // Predicated region
    $region14: #{tpu_custom_call.1} parent=1 // pred_check
      _
    $region15: #{tpu_custom_call.1} parent=1 // pred_check_branch
      %25 = sbr.rel (0) target = $region17
    $region16: #{tpu_custom_call.1} parent=1 // pred_region
      %s27 = ssub.s32 2048, 2048
      %28 = vsyncadd [#allocation3], %s27
      %s29 = sshll.u32 [#allocation2], 4
      %s30 = int_to_ptr.vmem [resolvable:$true] %s29
      %35 = dma.hbm_to_vmem [thread:$0]  %s3, 2048, %s30, [#allocation3], 128, 128, 8
    $region17: #{tpu_custom_call.1} parent=1 // pred_fallthru
      _
    // Predicated region
    $region18: #{tpu_custom_call.1} parent=1 // pred_check
      _
    $region19: #{tpu_custom_call.1} parent=1 // pred_check_branch
      %37 = sbr.rel (0) target = $region21
    $region20: #{tpu_custom_call.1} parent=1 // pred_region
      _
    $region21: #{tpu_custom_call.1} parent=1 // pred_fallthru
      _
    // Predicated region
    $region22: #{tpu_custom_call.1} parent=1 // pred_check
      _
    $region23: #{tpu_custom_call.1} parent=1 // pred_check_branch
      %39 = sbr.rel (0) target = $region25
    $region24: #{tpu_custom_call.1} parent=1 // pred_region
      %s41 = ssub.s32 2048, 2048
      %42 = vsyncadd [#allocation5], %s41
      %s43 = sshll.u32 [#allocation4], 4
      %s44 = int_to_ptr.vmem [resolvable:$true] %s43
      %49 = dma.hbm_to_vmem [thread:$0]  %s5, 2048, %s44, [#allocation5], 64, 64, 4
    $region25: #{tpu_custom_call.1} parent=1 // pred_fallthru
      _
    // Predicated region
    $region26: #{tpu_custom_call.1} parent=1 // pred_check
      _
    $region27: #{tpu_custom_call.1} parent=1 // pred_check_branch
      %51 = sbr.rel (0) target = $region29
    $region28: #{tpu_custom_call.1} parent=1 // pred_region
      _
    $region29: #{tpu_custom_call.1} parent=1 // pred_fallthru
      _
    // Predicated region
    $region30: #{tpu_custom_call.1} parent=1 // pred_check
      _
    $region31: #{tpu_custom_call.1} parent=1 // pred_check_branch
      %53 = sbr.rel (0) target = $region33
    $region32: #{tpu_custom_call.1} parent=1 // pred_region
      _
    $region33: #{tpu_custom_call.1} parent=1 // pred_fallthru
      _
    // Predicated region
    $region34: #{tpu_custom_call.1} parent=1 // pred_check
      _
    $region35: #{tpu_custom_call.1} parent=1 // pred_check_branch
      %55 = sbr.rel (0) target = $region37
    $region36: #{tpu_custom_call.1} parent=1 // pred_region
      _
    $region37: #{tpu_custom_call.1} parent=1 // pred_fallthru
      _
    // Predicated region
    $region38: #{tpu_custom_call.1} parent=1 // pred_check
      _
    $region39: #{tpu_custom_call.1} parent=1 // pred_check_branch
      %57 = sbr.rel (0) target = $region41
    $region40: #{tpu_custom_call.1} parent=1 // pred_region
      _
    $region41: #{tpu_custom_call.1} parent=1 // pred_fallthru
      _
    // Predicated region
    $region42: #{tpu_custom_call.1} parent=1 // pred_check
      _
    $region43: #{tpu_custom_call.1} parent=1 // pred_check_branch
      %59 = sbr.rel (0) target = $region45
    $region44: #{tpu_custom_call.1} parent=1 // pred_region
      _
    $region45: #{tpu_custom_call.1} parent=1 // pred_fallthru
      _
    // Predicated region
    $region46: #{tpu_custom_call.1} parent=1 // pred_check
      _
    $region47: #{tpu_custom_call.1} parent=1 // pred_check_branch
      %61 = sbr.rel (0) target = $region49
    $region48: #{tpu_custom_call.1} parent=1 // pred_region
      %62 = dma.done [#allocation3], 2048
    $region49: #{tpu_custom_call.1} parent=1 // pred_fallthru
      _
    // Predicated region
    $region50: #{tpu_custom_call.1} parent=1 // pred_check
      _
    $region51: #{tpu_custom_call.1} parent=1 // pred_check_branch
      %64 = sbr.rel (0) target = $region53
    $region52: #{tpu_custom_call.1} parent=1 // pred_region
      %65 = dma.done [#allocation5], 2048
    $region53: #{tpu_custom_call.1} parent=1 // pred_fallthru
      _
    %v67 = vld [vmem:[%s0] sm:$0xff]
    %v68 = vld [vmem:[%s0 + $0x8] sm:$0xff]
    %v69 = vpack.c.bf16 %v68, %v67
    %v70 = vld [vmem:[%s1] sm:$0xf]
    %v71 = vld [vmem:[%s1 + $0x4] sm:$0xf]
    %v72 = vld [vmem:[%s2] sm:$0x1]
    %v74 = vlaneseq
    %v75 = vshrl.u32 %v74, 7
    %v76 = vsub.s32 0, %v75
    %v77 = vrot.slane %v72, %v76
    %v81 = vunpack.c.l.b16 %v70
    %v82 = vunpack.c.l.b16 %v71
    %v83 = vpack.c.b16 %v82, %v81
    %vm85 = vcmask 130048
    %v87 = vsel %vm85, %v69, 0
    %89 = vmatprep.subr.bf16.mxu0 0
    %90 = vmatpush1.bf16.msra.mxu0 %v83
    %91 = vmatprep.subr.bf16.mxu0 0
    %92 = vmatpush1.bf16.msra.mxu0 0
    %93 = vmatprep.subr.bf16.mxu0 0
    %94 = vmatpush1.bf16.msra.mxu0 0
    %95 = vmatprep.subr.bf16.mxu0 0
    %96 = vmatpush1.bf16.msra.mxu0 0
    %97 = vmatprep.subr.bf16.mxu0 0
    %98 = vmatpush1.bf16.msra.mxu0 0
    %99 = vmatprep.subr.bf16.mxu0 0
    %100 = vmatpush1.bf16.msra.mxu0 0
    %101 = vmatprep.subr.bf16.mxu0 0
    %102 = vmatpush1.bf16.msra.mxu0 0
    %103 = vmatprep.subr.bf16.mxu0 0
    %104 = vmatpush1.bf16.msra.mxu0 0
    %105 = vmatprep.subr.bf16.mxu0 0
    %106 = vmatpush1.bf16.msra.mxu0 0
    %107 = vmatprep.subr.bf16.mxu0 0
    %108 = vmatpush1.bf16.msra.mxu0 0
    %109 = vmatprep.subr.bf16.mxu0 0
    %110 = vmatpush1.bf16.msra.mxu0 0
    %111 = vmatprep.subr.bf16.mxu0 0
    %112 = vmatpush1.bf16.msra.mxu0 0
    %113 = vmatprep.subr.bf16.mxu0 0
    %114 = vmatpush1.bf16.msra.mxu0 0
    %115 = vmatprep.subr.bf16.mxu0 0
    %116 = vmatpush1.bf16.msra.mxu0 0
    %117 = vmatprep.subr.bf16.mxu0 0
    %118 = vmatpush1.bf16.msra.mxu0 0
    %119 = vmatprep.subr.bf16.mxu0 0
    %120 = vmatpush1.bf16.msra.mxu0 0
    %121 = vmatprep.mubr.bf16.mxu0 0
    %122 = vmatmul.mubr.bf16.gmra.mrb[0].mxu0 %v87
    %v123 = vpop.f32.mrb[0].mxu0
    %v124 = vadd.f32 %v77, %v123
    %v125 = vpop.f32.mrb[0].mxu0
    %v126 = vpop.f32.mrb[0].mxu0
    %v127 = vadd.f32 %v77, %v126
    %v128 = vpop.f32.mrb[0].mxu0
    %129 = vdwg.mxu0
    %v130 = vmax.f32 %v124, 0.0
    %v131 = vmax.f32 %v127, 0.0
    %v132 = vpack.c.bf16 %v131, %v130
    %v133 = vld [vmem:[#allocation2] sm:$0xff]
    %v134 = vld [vmem:[#allocation2 + $0x8] sm:$0xff]
    %v135 = vld [vmem:[#allocation2 + $0x10] sm:$0xff]
    %v136 = vld [vmem:[#allocation2 + $0x18] sm:$0xff]
    %v137 = vld [vmem:[#allocation2 + $0x20] sm:$0xff]
    %v138 = vld [vmem:[#allocation2 + $0x28] sm:$0xff]
    %v139 = vld [vmem:[#allocation2 + $0x30] sm:$0xff]
    %v140 = vld [vmem:[#allocation2 + $0x38] sm:$0xff]
    %v141 = vld [vmem:[#allocation2 + $0x40] sm:$0xff]
    %v142 = vld [vmem:[#allocation2 + $0x48] sm:$0xff]
    %v143 = vld [vmem:[#allocation2 + $0x50] sm:$0xff]
    %v144 = vld [vmem:[#allocation2 + $0x58] sm:$0xff]
    %v145 = vld [vmem:[#allocation2 + $0x60] sm:$0xff]
    %v146 = vld [vmem:[#allocation2 + $0x68] sm:$0xff]
    %v147 = vld [vmem:[#allocation2 + $0x70] sm:$0xff]
    %v148 = vld [vmem:[#allocation2 + $0x78] sm:$0xff]
    %v149 = vld [vmem:[%s4] sm:$0x3]
    %v151 = vlaneseq
    %v152 = vshrl.u32 %v151, 7
    %v153 = vsub.s32 0, %v152
    %v154 = vrot.slane %v149, %v153
    %v155 = vlaneseq
    %v156 = vshrl.u32 %v155, 7
    %v157 = vsub.s32 1, %v156
    %v158 = vrot.slane %v149, %v157
    %v177 = vunpack.c.l.b16 %v133
    %v178 = vunpack.c.h.b16 %v133
    %v179 = vunpack.c.l.b16 %v134
    %v180 = vunpack.c.h.b16 %v134
    %v181 = vunpack.c.l.b16 %v135
    %v182 = vunpack.c.h.b16 %v135
    %v183 = vunpack.c.l.b16 %v136
    %v184 = vunpack.c.h.b16 %v136
    %v185 = vunpack.c.l.b16 %v137
    %v186 = vunpack.c.h.b16 %v137
    %v187 = vunpack.c.l.b16 %v138
    %v188 = vunpack.c.h.b16 %v138
    %v189 = vunpack.c.l.b16 %v139
    %v190 = vunpack.c.h.b16 %v139
    %v191 = vunpack.c.l.b16 %v140
    %v192 = vunpack.c.h.b16 %v140
    %v193 = vunpack.c.l.b16 %v141
    %v194 = vunpack.c.h.b16 %v141
    %v195 = vunpack.c.l.b16 %v142
    %v196 = vunpack.c.h.b16 %v142
    %v197 = vunpack.c.l.b16 %v143
    %v198 = vunpack.c.h.b16 %v143
    %v199 = vunpack.c.l.b16 %v144
    %v200 = vunpack.c.h.b16 %v144
    %v201 = vunpack.c.l.b16 %v145
    %v202 = vunpack.c.h.b16 %v145
    %v203 = vunpack.c.l.b16 %v146
    %v204 = vunpack.c.h.b16 %v146
    %v205 = vunpack.c.l.b16 %v147
    %v206 = vunpack.c.h.b16 %v147
    %v207 = vunpack.c.l.b16 %v148
    %v208 = vunpack.c.h.b16 %v148
    %v209 = vpack.c.b16 %v179, %v177
    %v210 = vpack.c.b16 %v180, %v178
    %v211 = vpack.c.b16 %v183, %v181
    %v212 = vpack.c.b16 %v184, %v182
    %v213 = vpack.c.b16 %v187, %v185
    %v214 = vpack.c.b16 %v188, %v186
    %v215 = vpack.c.b16 %v191, %v189
    %v216 = vpack.c.b16 %v192, %v190
    %v217 = vpack.c.b16 %v195, %v193
    %v218 = vpack.c.b16 %v196, %v194
    %v219 = vpack.c.b16 %v199, %v197
    %v220 = vpack.c.b16 %v200, %v198
    %v221 = vpack.c.b16 %v203, %v201
    %v222 = vpack.c.b16 %v204, %v202
    %v223 = vpack.c.b16 %v207, %v205
    %v224 = vpack.c.b16 %v208, %v206
    %241 = vmatprep.subr.bf16.mxu0 %v210
    %242 = vmatpush1.bf16.msra.mxu0 %v209
    %243 = vmatprep.subr.bf16.mxu0 %v212
    %244 = vmatpush1.bf16.msra.mxu0 %v211
    %245 = vmatprep.subr.bf16.mxu0 %v214
    %246 = vmatpush1.bf16.msra.mxu0 %v213
    %247 = vmatprep.subr.bf16.mxu0 %v216
    %248 = vmatpush1.bf16.msra.mxu0 %v215
    %249 = vmatprep.subr.bf16.mxu0 %v218
    %250 = vmatpush1.bf16.msra.mxu0 %v217
    %251 = vmatprep.subr.bf16.mxu0 %v220
    %252 = vmatpush1.bf16.msra.mxu0 %v219
    %253 = vmatprep.subr.bf16.mxu0 %v222
    %254 = vmatpush1.bf16.msra.mxu0 %v221
    %255 = vmatprep.subr.bf16.mxu0 %v224
    %256 = vmatpush1.bf16.msra.mxu0 %v223
    %257 = vmatprep.subr.bf16.mxu0 0
    %258 = vmatpush1.bf16.msra.mxu0 0
    %259 = vmatprep.subr.bf16.mxu0 0
    %260 = vmatpush1.bf16.msra.mxu0 0
    %261 = vmatprep.subr.bf16.mxu0 0
    %262 = vmatpush1.bf16.msra.mxu0 0
    %263 = vmatprep.subr.bf16.mxu0 0
    %264 = vmatpush1.bf16.msra.mxu0 0
    %265 = vmatprep.subr.bf16.mxu0 0
    %266 = vmatpush1.bf16.msra.mxu0 0
    %267 = vmatprep.subr.bf16.mxu0 0
    %268 = vmatpush1.bf16.msra.mxu0 0
    %269 = vmatprep.subr.bf16.mxu0 0
    %270 = vmatpush1.bf16.msra.mxu0 0
    %271 = vmatprep.subr.bf16.mxu0 0
    %272 = vmatpush1.bf16.msra.mxu0 0
    %273 = vmatprep.mubr.bf16.mxu0 0
    %274 = vmatmul.mubr.bf16.gmra.mrb[0].mxu0 %v132
    %v275 = vpop.f32.mrb[0].mxu0
    %v276 = vadd.f32 %v154, %v275
    %v277 = vpop.f32.mrb[0].mxu0
    %v278 = vadd.f32 %v158, %v277
    %v279 = vpop.f32.mrb[0].mxu0
    %v280 = vadd.f32 %v154, %v279
    %v281 = vpop.f32.mrb[0].mxu0
    %v282 = vadd.f32 %v158, %v281
    %283 = vdwg.mxu0
    %v284 = vmax.f32 %v276, 0.0
    %v285 = vmax.f32 %v278, 0.0
    %v286 = vmax.f32 %v280, 0.0
    %v287 = vmax.f32 %v282, 0.0
    %v288 = vpack.c.bf16 %v286, %v284
    %v289 = vpack.c.bf16 %v287, %v285
    %v290 = vld [vmem:[#allocation4] sm:$0xf]
    %v291 = vld [vmem:[#allocation4 + $0x4] sm:$0xf]
    %v292 = vld [vmem:[#allocation4 + $0x8] sm:$0xf]
    %v293 = vld [vmem:[#allocation4 + $0xc] sm:$0xf]
    %v294 = vld [vmem:[#allocation4 + $0x10] sm:$0xf]
    %v295 = vld [vmem:[#allocation4 + $0x14] sm:$0xf]
    %v296 = vld [vmem:[#allocation4 + $0x18] sm:$0xf]
    %v297 = vld [vmem:[#allocation4 + $0x1c] sm:$0xf]
    %v298 = vld [vmem:[#allocation4 + $0x20] sm:$0xf]
    %v299 = vld [vmem:[#allocation4 + $0x24] sm:$0xf]
    %v300 = vld [vmem:[#allocation4 + $0x28] sm:$0xf]
    %v301 = vld [vmem:[#allocation4 + $0x2c] sm:$0xf]
    %v302 = vld [vmem:[#allocation4 + $0x30] sm:$0xf]
    %v303 = vld [vmem:[#allocation4 + $0x34] sm:$0xf]
    %v304 = vld [vmem:[#allocation4 + $0x38] sm:$0xf]
    %v305 = vld [vmem:[#allocation4 + $0x3c] sm:$0xf]
    %v306 = vld [vmem:[#allocation4 + $0x40] sm:$0xf]
    %v307 = vld [vmem:[#allocation4 + $0x44] sm:$0xf]
    %v308 = vld [vmem:[#allocation4 + $0x48] sm:$0xf]
    %v309 = vld [vmem:[#allocation4 + $0x4c] sm:$0xf]
    %v310 = vld [vmem:[#allocation4 + $0x50] sm:$0xf]
    %v311 = vld [vmem:[#allocation4 + $0x54] sm:$0xf]
    %v312 = vld [vmem:[#allocation4 + $0x58] sm:$0xf]
    %v313 = vld [vmem:[#allocation4 + $0x5c] sm:$0xf]
    %v314 = vld [vmem:[#allocation4 + $0x60] sm:$0xf]
    %v315 = vld [vmem:[#allocation4 + $0x64] sm:$0xf]
    %v316 = vld [vmem:[#allocation4 + $0x68] sm:$0xf]
    %v317 = vld [vmem:[#allocation4 + $0x6c] sm:$0xf]
    %v318 = vld [vmem:[#allocation4 + $0x70] sm:$0xf]
    %v319 = vld [vmem:[#allocation4 + $0x74] sm:$0xf]
    %v320 = vld [vmem:[#allocation4 + $0x78] sm:$0xf]
    %v321 = vld [vmem:[#allocation4 + $0x7c] sm:$0xf]
    %v322 = vld [vmem:[%s6] sm:$0x1]
    %v324 = vlaneseq
    %v325 = vshrl.u32 %v324, 7
    %v326 = vsub.s32 0, %v325
    %v327 = vrot.slane %v322, %v326
    %v361 = vunpack.c.l.b16 %v290
    %v362 = vunpack.c.l.b16 %v291
    %v363 = vunpack.c.l.b16 %v292
    %v364 = vunpack.c.l.b16 %v293
    %v365 = vunpack.c.l.b16 %v294
    %v366 = vunpack.c.l.b16 %v295
    %v367 = vunpack.c.l.b16 %v296
    %v368 = vunpack.c.l.b16 %v297
    %v369 = vunpack.c.l.b16 %v298
    %v370 = vunpack.c.l.b16 %v299
    %v371 = vunpack.c.l.b16 %v300
    %v372 = vunpack.c.l.b16 %v301
    %v373 = vunpack.c.l.b16 %v302
    %v374 = vunpack.c.l.b16 %v303
    %v375 = vunpack.c.l.b16 %v304
    %v376 = vunpack.c.l.b16 %v305
    %v377 = vunpack.c.l.b16 %v306
    %v378 = vunpack.c.l.b16 %v307
    %v379 = vunpack.c.l.b16 %v308
    %v380 = vunpack.c.l.b16 %v309
    %v381 = vunpack.c.l.b16 %v310
    %v382 = vunpack.c.l.b16 %v311
    %v383 = vunpack.c.l.b16 %v312
    %v384 = vunpack.c.l.b16 %v313
    %v385 = vunpack.c.l.b16 %v314
    %v386 = vunpack.c.l.b16 %v315
    %v387 = vunpack.c.l.b16 %v316
    %v388 = vunpack.c.l.b16 %v317
    %v389 = vunpack.c.l.b16 %v318
    %v390 = vunpack.c.l.b16 %v319
    %v391 = vunpack.c.l.b16 %v320
    %v392 = vunpack.c.l.b16 %v321
    %v393 = vpack.c.b16 %v362, %v361
    %v394 = vpack.c.b16 %v364, %v363
    %v395 = vpack.c.b16 %v366, %v365
    %v396 = vpack.c.b16 %v368, %v367
    %v397 = vpack.c.b16 %v370, %v369
    %v398 = vpack.c.b16 %v372, %v371
    %v399 = vpack.c.b16 %v374, %v373
    %v400 = vpack.c.b16 %v376, %v375
    %v401 = vpack.c.b16 %v378, %v377
    %v402 = vpack.c.b16 %v380, %v379
    %v403 = vpack.c.b16 %v382, %v381
    %v404 = vpack.c.b16 %v384, %v383
    %v405 = vpack.c.b16 %v386, %v385
    %v406 = vpack.c.b16 %v388, %v387
    %v407 = vpack.c.b16 %v390, %v389
    %v408 = vpack.c.b16 %v392, %v391
    %425 = vmatprep.subr.bf16.mxu0 0
    %426 = vmatpush1.bf16.msra.mxu0 %v393
    %427 = vmatprep.subr.bf16.mxu0 0
    %428 = vmatpush1.bf16.msra.mxu0 %v394
    %429 = vmatprep.subr.bf16.mxu0 0
    %430 = vmatpush1.bf16.msra.mxu0 %v395
    %431 = vmatprep.subr.bf16.mxu0 0
    %432 = vmatpush1.bf16.msra.mxu0 %v396
    %433 = vmatprep.subr.bf16.mxu0 0
    %434 = vmatpush1.bf16.msra.mxu0 %v397
    %435 = vmatprep.subr.bf16.mxu0 0
    %436 = vmatpush1.bf16.msra.mxu0 %v398
    %437 = vmatprep.subr.bf16.mxu0 0
    %438 = vmatpush1.bf16.msra.mxu0 %v399
    %439 = vmatprep.subr.bf16.mxu0 0
    %440 = vmatpush1.bf16.msra.mxu0 %v400
    %441 = vmatprep.subr.bf16.mxu0 0
    %442 = vmatpush1.bf16.msra.mxu0 %v401
    %443 = vmatprep.subr.bf16.mxu0 0
    %444 = vmatpush1.bf16.msra.mxu0 %v402
    %445 = vmatprep.subr.bf16.mxu0 0
    %446 = vmatpush1.bf16.msra.mxu0 %v403
    %447 = vmatprep.subr.bf16.mxu0 0
    %448 = vmatpush1.bf16.msra.mxu0 %v404
    %449 = vmatprep.subr.bf16.mxu0 0
    %450 = vmatpush1.bf16.msra.mxu0 %v405
    %451 = vmatprep.subr.bf16.mxu0 0
    %452 = vmatpush1.bf16.msra.mxu0 %v406
    %453 = vmatprep.subr.bf16.mxu0 0
    %454 = vmatpush1.bf16.msra.mxu0 %v407
    %455 = vmatprep.subr.bf16.mxu0 0
    %456 = vmatpush1.bf16.msra.mxu0 %v408
    %457 = vmatprep.mubr.bf16.mxu0 %v289
    %458 = vmatmul.mubr.bf16.gmra.mrb[0].mxu0 %v288
    %v459 = vpop.f32.mrb[0].mxu0
    %v460 = vadd.f32 %v327, %v459
    %v461 = vpop.f32.mrb[0].mxu0
    %v462 = vpop.f32.mrb[0].mxu0
    %v463 = vadd.f32 %v327, %v462
    %v464 = vpop.f32.mrb[0].mxu0
    %465 = vdwg.mxu0
    %v466 = vmax.f32 %v460, 0.0
    %v467 = vmax.f32 %v463, 0.0
    %v468 = vpack.c.bf16 %v467, %v466
    %v469 = vld [vmem:[%s7] sm:$0xf]
    %v470 = vld [vmem:[%s7 + $0x4] sm:$0xf]
    %v471 = vld [vmem:[%s7 + $0x8] sm:$0xf]
    %v472 = vld [vmem:[%s7 + $0xc] sm:$0xf]
    %v473 = vld [vmem:[%s7 + $0x10] sm:$0xf]
    %v474 = vld [vmem:[%s7 + $0x14] sm:$0xf]
    %v475 = vld [vmem:[%s7 + $0x18] sm:$0xf]
    %v476 = vld [vmem:[%s7 + $0x1c] sm:$0xf]
    %v477 = vld [vmem:[%s7 + $0x20] sm:$0xf]
    %v478 = vld [vmem:[%s7 + $0x24] sm:$0xf]
    %v479 = vld [vmem:[%s7 + $0x28] sm:$0xf]
    %v480 = vld [vmem:[%s7 + $0x2c] sm:$0xf]
    %v481 = vld [vmem:[%s7 + $0x30] sm:$0xf]
    %v482 = vld [vmem:[%s7 + $0x34] sm:$0xf]
    %v483 = vld [vmem:[%s7 + $0x38] sm:$0xf]
    %v484 = vld [vmem:[%s7 + $0x3c] sm:$0xf]
    %v485 = vld [vmem:[%s8] sm:$0x1]
    %v487 = vlaneseq
    %v488 = vshrl.u32 %v487, 7
    %v489 = vsub.s32 0, %v488
    %v490 = vrot.slane %v485, %v489
    %v508 = vunpack.c.l.b16 %v469
    %v509 = vunpack.c.l.b16 %v470
    %v510 = vunpack.c.l.b16 %v471
    %v511 = vunpack.c.l.b16 %v472
    %v512 = vunpack.c.l.b16 %v473
    %v513 = vunpack.c.l.b16 %v474
    %v514 = vunpack.c.l.b16 %v475
    %v515 = vunpack.c.l.b16 %v476
    %v516 = vunpack.c.l.b16 %v477
    %v517 = vunpack.c.l.b16 %v478
    %v518 = vunpack.c.l.b16 %v479
    %v519 = vunpack.c.l.b16 %v480
    %v520 = vunpack.c.l.b16 %v481
    %v521 = vunpack.c.l.b16 %v482
    %v522 = vunpack.c.l.b16 %v483
    %v523 = vunpack.c.l.b16 %v484
    %v524 = vpack.c.b16 %v509, %v508
    %v525 = vpack.c.b16 %v511, %v510
    %v526 = vpack.c.b16 %v513, %v512
    %v527 = vpack.c.b16 %v515, %v514
    %v528 = vpack.c.b16 %v517, %v516
    %v529 = vpack.c.b16 %v519, %v518
    %v530 = vpack.c.b16 %v521, %v520
    %v531 = vpack.c.b16 %v523, %v522
    %540 = vmatprep.subr.bf16.mxu0 0
    %541 = vmatpush1.bf16.msra.mxu0 %v524
    %542 = vmatprep.subr.bf16.mxu0 0
    %543 = vmatpush1.bf16.msra.mxu0 %v525
    %544 = vmatprep.subr.bf16.mxu0 0
    %545 = vmatpush1.bf16.msra.mxu0 %v526
    %546 = vmatprep.subr.bf16.mxu0 0
    %547 = vmatpush1.bf16.msra.mxu0 %v527
    %548 = vmatprep.subr.bf16.mxu0 0
    %549 = vmatpush1.bf16.msra.mxu0 %v528
    %550 = vmatprep.subr.bf16.mxu0 0
    %551 = vmatpush1.bf16.msra.mxu0 %v529
    %552 = vmatprep.subr.bf16.mxu0 0
    %553 = vmatpush1.bf16.msra.mxu0 %v530
    %554 = vmatprep.subr.bf16.mxu0 0
    %555 = vmatpush1.bf16.msra.mxu0 %v531
    %556 = vmatprep.subr.bf16.mxu0 0
    %557 = vmatpush1.bf16.msra.mxu0 0
    %558 = vmatprep.subr.bf16.mxu0 0
    %559 = vmatpush1.bf16.msra.mxu0 0
    %560 = vmatprep.subr.bf16.mxu0 0
    %561 = vmatpush1.bf16.msra.mxu0 0
    %562 = vmatprep.subr.bf16.mxu0 0
    %563 = vmatpush1.bf16.msra.mxu0 0
    %564 = vmatprep.subr.bf16.mxu0 0
    %565 = vmatpush1.bf16.msra.mxu0 0
    %566 = vmatprep.subr.bf16.mxu0 0
    %567 = vmatpush1.bf16.msra.mxu0 0
    %568 = vmatprep.subr.bf16.mxu0 0
    %569 = vmatpush1.bf16.msra.mxu0 0
    %570 = vmatprep.subr.bf16.mxu0 0
    %571 = vmatpush1.bf16.msra.mxu0 0
    %572 = vmatprep.mubr.bf16.mxu0 0
    %573 = vmatmul.mubr.bf16.gmra.mrb[0].mxu0 %v468
    %v574 = vpop.f32.mrb[0].mxu0
    %v575 = vadd.f32 %v490, %v574
    %v576 = vpop.f32.mrb[0].mxu0
    %v577 = vpop.f32.mrb[0].mxu0
    %v578 = vadd.f32 %v490, %v577
    %v579 = vpop.f32.mrb[0].mxu0
    %580 = vdwg.mxu0
    %v581 = vmax.f32 %v575, 0.0
    %v582 = vmax.f32 %v578, 0.0
    %v583 = vpack.c.bf16 %v582, %v581
    %v584 = vld [vmem:[%s9] sm:$0xf]
    %v585 = vld [vmem:[%s9 + $0x4] sm:$0xf]
    %v586 = vld [vmem:[%s9 + $0x8] sm:$0xf]
    %v587 = vld [vmem:[%s9 + $0xc] sm:$0xf]
    %v588 = vld [vmem:[%s10] sm:$0x1]
    %v590 = vlaneseq
    %v591 = vshrl.u32 %v590, 7
    %v592 = vsub.s32 0, %v591
    %v593 = vrot.slane %v588, %v592
    %v599 = vunpack.c.l.b16 %v584
    %v600 = vunpack.c.l.b16 %v585
    %v601 = vunpack.c.l.b16 %v586
    %v602 = vunpack.c.l.b16 %v587
    %v603 = vpack.c.b16 %v600, %v599
    %v604 = vpack.c.b16 %v602, %v601
    %vm607 = vcmask 261120
    %v609 = vsel %vm607, %v583, 0
    %611 = vmatprep.subr.bf16.mxu0 0
    %612 = vmatpush1.bf16.msra.mxu0 %v603
    %613 = vmatprep.subr.bf16.mxu0 0
    %614 = vmatpush1.bf16.msra.mxu0 %v604
    %615 = vmatprep.subr.bf16.mxu0 0
    %616 = vmatpush1.bf16.msra.mxu0 0
    %617 = vmatprep.subr.bf16.mxu0 0
    %618 = vmatpush1.bf16.msra.mxu0 0
    %619 = vmatprep.subr.bf16.mxu0 0
    %620 = vmatpush1.bf16.msra.mxu0 0
    %621 = vmatprep.subr.bf16.mxu0 0
    %622 = vmatpush1.bf16.msra.mxu0 0
    %623 = vmatprep.subr.bf16.mxu0 0
    %624 = vmatpush1.bf16.msra.mxu0 0
    %625 = vmatprep.subr.bf16.mxu0 0
    %626 = vmatpush1.bf16.msra.mxu0 0
    %627 = vmatprep.subr.bf16.mxu0 0
    %628 = vmatpush1.bf16.msra.mxu0 0
    %629 = vmatprep.subr.bf16.mxu0 0
    %630 = vmatpush1.bf16.msra.mxu0 0
    %631 = vmatprep.subr.bf16.mxu0 0
    %632 = vmatpush1.bf16.msra.mxu0 0
    %633 = vmatprep.subr.bf16.mxu0 0
    %634 = vmatpush1.bf16.msra.mxu0 0
    %635 = vmatprep.subr.bf16.mxu0 0
    %636 = vmatpush1.bf16.msra.mxu0 0
    %637 = vmatprep.subr.bf16.mxu0 0
    %638 = vmatpush1.bf16.msra.mxu0 0
    %639 = vmatprep.subr.bf16.mxu0 0
    %640 = vmatpush1.bf16.msra.mxu0 0
    %641 = vmatprep.subr.bf16.mxu0 0
    %642 = vmatpush1.bf16.msra.mxu0 0
    %643 = vmatprep.mubr.bf16.mxu0 0
    %644 = vmatmul.mubr.bf16.gmra.mrb[0].mxu0 %v609
    %v645 = vpop.f32.mrb[0].mxu0
    %v646 = vadd.f32 %v593, %v645
    %v647 = vpop.f32.mrb[0].mxu0
    %v648 = vpop.f32.mrb[0].mxu0
    %v649 = vadd.f32 %v593, %v648
    %v650 = vpop.f32.mrb[0].mxu0
    %651 = vdwg.mxu0
    %vm652 = vcmask 31744
    %653 = vst.msk [vmem:[%s11] sm:$0xff] %vm652, %v646
    %654 = vst.msk [vmem:[%s11 + $0x8] sm:$0xff] %vm652, %v649
    // Predicated region
    $region54: #{tpu_custom_call.1} parent=1 // pred_check
      _
    $region55: #{tpu_custom_call.1} parent=1 // pred_check_branch
      %656 = sbr.rel (0) target = $region57
    $region56: #{tpu_custom_call.1} parent=1 // pred_region
      _
    $region57: #{tpu_custom_call.1} parent=1 // pred_fallthru
      _
    // Predicated region
    $region58: #{tpu_custom_call.1} parent=1 // pred_check
      _
    $region59: #{tpu_custom_call.1} parent=1 // pred_check_branch
      %658 = sbr.rel (0) target = $region61
    $region60: #{tpu_custom_call.1} parent=1 // pred_region
      _
    $region61: #{tpu_custom_call.1} parent=1 // pred_fallthru
      _
    %659 = vsyncpa [#allocation3], 1
    %660 = vsyncpa [#allocation5], 1

</llo_original>
